<compile_context>
chip_gen: v7x
topology: tpu7x:2x2x1
jax: 0.10.0
libtpu: 0.0.40
codegen_flags: <defaults>
</compile_context>

<pallas_src>
import functools

import jax
import jax.numpy as jnp
from jax.experimental import pallas as pl
from jax.experimental.pallas import tpu as pltpu

_EPS = 1e-12  # F.normalize default eps


def _message_norm_kernel(scale_ref, feats_ref, msg_ref, out_ref, *, native_mul):
    # scale_ref: SMEM (1,) f32 scalar parameter
    # feats_ref / msg_ref / out_ref: VMEM tiles of shape (TN, D)
    feats = feats_ref[...].astype(jnp.float32)
    msg_f32 = msg_ref[...].astype(jnp.float32)

    # Per-row squared L2 norms (XLU cross-lane reductions), shape (TN, 1).
    msg_sq_sum = jnp.sum(msg_f32 * msg_f32, axis=-1, keepdims=True)
    feats_sq_sum = jnp.sum(feats * feats, axis=-1, keepdims=True)

    # max(sqrt(s), eps) == sqrt(max(s, eps^2)); rsqrt goes to the EUP slot.
    inv_msg_norm = jax.lax.rsqrt(jnp.maximum(msg_sq_sum, _EPS * _EPS))
    feats_norm = jnp.sqrt(feats_sq_sum)

    # Single fused per-row coefficient -> one (TN, D) multiply.
    coef = (scale_ref[0] * feats_norm) * inv_msg_norm  # (TN, 1), f32

    if native_mul:
        # 16-bit I/O on bf16-VPU chips: multiply natively in the I/O dtype,
        # only the tiny (TN, 1) coefficient is downcast.
        out_ref[...] = msg_ref[...] * coef.astype(out_ref.dtype)
    else:
        out_ref[...] = (msg_f32 * coef).astype(out_ref.dtype)


def _cdiv(a, b):
    return (a + b - 1) // b


def _round_up(x, m):
    return ((x + m - 1) // m) * m


def _sublane_pack(dtype):
    # 8 sublanes for 32-bit, 16 for 16-bit, 32 for 8-bit dtypes.
    itemsize = jnp.dtype(dtype).itemsize
    return max(8, 32 // itemsize)


def _device_kind():
    try:
        return jax.devices()[0].device_kind.lower()
    except Exception:  # pragma: no cover - defensive
        return ""


def _target_config():
    """Returns (vmem_budget_bytes, parallel_tensorcores, has_bf16_vpu)."""
    kind = _device_kind()
    if "v5 lite" in kind or "v5lite" in kind or "v5e" in kind:
        # v5e: 16 MiB scoped default, single TC, no bf16 VPU.
        return 12 * 1024 * 1024, 1, False
    if "v6" in kind:
        # v6e: 128 MiB physical VMEM, single TC, bf16 VPU.
        return 24 * 1024 * 1024, 1, True
    if "7" in kind:
        # v7x: 64 MiB VMEM/TC but 3.2 TB/s HBM -> wants big blocks, 2 TCs.
        return 24 * 1024 * 1024, 2, True
    if "v4" in kind or "v5p" in kind or "v5" in kind:
        # Megacore chips (2 TCs), conservative budget.
        return 12 * 1024 * 1024, 2, False
    # Unknown backend: conservative (safe under v5e's 16 MiB scoped default).
    return 12 * 1024 * 1024, 1, False


def _even_grid_tile_rows(n_rows, sublane, max_tile_rows):
    """Smallest even grid count whose tile fits the budget (2-TC chips)."""
    g = 2
    while g <= 2 * n_rows + 2:
        tile = _round_up(_cdiv(n_rows, g), sublane)
        if tile <= max_tile_rows:
            actual = _cdiv(n_rows, tile)
            if actual == 1 or actual % 2 == 0:
                return tile
        g += 2
    return max_tile_rows  # fallback: budget-sized tile


def message_norm(feats, msg, scale, *, tile_rows=None, vmem_budget_bytes=None):
    """Pallas MessageNorm forward. feats, msg: (N, D); scale: (1,) f32."""
    assert feats.shape == msg.shape, "feats and msg must share shape"
    N, D = feats.shape
    assert D % 128 == 0, "feature dim must be a multiple of 128 for lane tiling"

    budget, n_parallel_cores, bf16_vpu = _target_config()
    if vmem_budget_bytes is None:
        vmem_budget_bytes = budget

    itemsize = max(jnp.dtype(feats.dtype).itemsize, jnp.dtype(msg.dtype).itemsize)
    sublane = max(_sublane_pack(feats.dtype), _sublane_pack(msg.dtype))

    if tile_rows is None:
        # Double-buffered footprint: 3 arrays (feats, msg, out) x 2 buffers.
        bytes_per_row = 3 * 2 * D * itemsize
        max_tile_rows = max(sublane, min(8192, vmem_budget_bytes // bytes_per_row))
        max_tile_rows = max(sublane, (max_tile_rows // sublane) * sublane)

        if n_parallel_cores > 1 and N > sublane:
            # Two TensorCores share the "parallel" row axis: keep the grid
            # count even so neither core idles on the last step.
            tile_rows = _even_grid_tile_rows(N, sublane, max_tile_rows)
        else:
            # Single-TC chips: largest budget-fitting block (no clamp).
            tile_rows = min(max_tile_rows, _round_up(N, sublane))
        tile_rows = max(sublane, tile_rows)

    grid = (pl.cdiv(N, tile_rows),)  # tail block (N % tile_rows) masked by Pallas
    row_spec = pl.BlockSpec((tile_rows, D), lambda i: (i, 0))

    # Final (TN, D) multiply natively in the I/O dtype only where the VPU has
    # a bf16 path (v6e/v7x); v5e keeps the f32 path.
    native_mul = bf16_vpu and jnp.dtype(msg.dtype).itemsize == 2
    kernel = functools.partial(_message_norm_kernel, native_mul=native_mul)

    # Explicit VMEM limit: actual double-buffered footprint + generous
    # headroom, independent of the per-generation scoped default.
    footprint = 3 * 2 * tile_rows * D * itemsize
    vmem_limit = min(max(int(1.25 * vmem_budget_bytes), footprint) + (4 << 20),
                     48 * 1024 * 1024)

    cost = pl.CostEstimate(
        flops=5 * N * D,
        transcendentals=2 * N,
        bytes_accessed=3 * N * D * itemsize,
    )

    return pl.pallas_call(
        kernel,
        out_shape=jax.ShapeDtypeStruct((N, D), msg.dtype),
        grid=grid,
        in_specs=[
            pl.BlockSpec(memory_space=pltpu.SMEM),  # scale (scalar param)
            row_spec,                               # feats
            row_spec,                               # msg
        ],
        out_specs=row_spec,
        compiler_params=pltpu.CompilerParams(
            dimension_semantics=("parallel",),
            vmem_limit_bytes=int(vmem_limit),
        ),
        cost_estimate=cost,
    )(scale, feats, msg)


def message_norm_ref(feats, msg, scale):
    """Pure-JAX reference mirroring the PyTorch forward."""
    feats = feats.astype(jnp.float32)
    msg = msg.astype(jnp.float32)
    msg_norm = jnp.sqrt(jnp.sum(msg * msg, axis=-1, keepdims=True))
    msg_n = msg / jnp.maximum(msg_norm, _EPS)
    feats_norm = jnp.sqrt(jnp.sum(feats * feats, axis=-1, keepdims=True))
    return msg_n * feats_norm * scale[0]


if __name__ == "__main__":
    key = jax.random.PRNGKey(0)
    k1, k2, k3, k4, k5, k6 = jax.random.split(key, 6)

    # nn.Parameter(torch.FloatTensor([1.0])) -> deterministic scale = 1.0
    scale = jnp.array([1.0], dtype=jnp.float32)

    # Case 1: small, evenly tiled f32.
    N, D = 64, 128
    feats = jax.random.normal(k1, (N, D), dtype=jnp.float32)
    msg = jax.random.normal(k2, (N, D), dtype=jnp.float32)
    out = jax.block_until_ready(message_norm(feats, msg, scale))
    ref = message_norm_ref(feats, msg, scale)
    assert out.shape == (N, D)
    assert jnp.allclose(out, ref, atol=1e-5, rtol=1e-5), "mismatch vs reference"

    # Case 2: ragged node count (tail block handled via pl.cdiv + masking).
    N2, D2 = 100, 256
    feats2 = jax.random.normal(k3, (N2, D2), dtype=jnp.float32)
    msg2 = jax.random.normal(k4, (N2, D2), dtype=jnp.float32)
    out2 = jax.block_until_ready(message_norm(feats2, msg2, scale))
    ref2 = message_norm_ref(feats2, msg2, scale)
    assert out2.shape == (N2, D2)
    assert jnp.allclose(out2, ref2, atol=1e-5, rtol=1e-5), "mismatch (ragged)"

    # Case 3: bf16 I/O (exercises the native-dtype final multiply on v6e/v7x,
    # f32 path on v5e) — looser tolerance for the 16-bit output.
    N3, D3 = 48, 128
    feats3 = jax.random.normal(k5, (N3, D3), dtype=jnp.float32).astype(jnp.bfloat16)
    msg3 = jax.random.normal(k6, (N3, D3), dtype=jnp.float32).astype(jnp.bfloat16)
    out3 = jax.block_until_ready(message_norm(feats3, msg3, scale))
    ref3 = message_norm_ref(feats3, msg3, scale)
    assert out3.shape == (N3, D3)
    assert jnp.allclose(out3.astype(jnp.float32), ref3, atol=3e-2, rtol=3e-2), \
        "mismatch vs reference (bf16)"

    print("KERNEL_OK")
</pallas_src>

<mosaic_0001>
module attributes {stable_mosaic.version = 11 : i64} {
  func.func @_message_norm_kernel(%arg0: i32, %arg1: memref<1xf32, #tpu.memory_space<smem>>, %arg2: memref<64x128xf32, #tpu.memory_space<vmem>>, %arg3: memref<64x128xf32, #tpu.memory_space<vmem>>, %arg4: memref<64x128xf32, #tpu.memory_space<vmem>>) attributes {dimension_semantics = [#tpu.dimension_semantics<parallel>], iteration_bounds = array<i64: 1>, scalar_prefetch = 0 : i64, scratch_operands = 0 : i64, tpu.core_type = #tpu.core_type<tc>, window_params = [{transform_indices = @transform_0, window_bounds = array<i64: 1>}, {transform_indices = @transform_1, window_bounds = array<i64: 64, 128>}, {transform_indices = @transform_2, window_bounds = array<i64: 64, 128>}, {transform_indices = @transform_3, window_bounds = array<i64: 64, 128>}]} {
    %c0 = arith.constant 0 : index
    %c0_0 = arith.constant 0 : index
    %0 = vector.load %arg2[%c0, %c0_0] : memref<64x128xf32, #tpu.memory_space<vmem>>, vector<64x128xf32>
    %c0_1 = arith.constant 0 : index
    %c0_2 = arith.constant 0 : index
    %1 = vector.load %arg3[%c0_1, %c0_2] : memref<64x128xf32, #tpu.memory_space<vmem>>, vector<64x128xf32>
    %2 = arith.mulf %1, %1 : vector<64x128xf32>
    %cst = arith.constant dense<0.000000e+00> : vector<64xf32>
    %3 = vector.multi_reduction <add>, %2, %cst [1] : vector<64x128xf32> to vector<64xf32>
    %4 = vector.shape_cast %3 : vector<64xf32> to vector<64x1xf32>
    %5 = arith.mulf %0, %0 : vector<64x128xf32>
    %cst_3 = arith.constant dense<0.000000e+00> : vector<64xf32>
    %6 = vector.multi_reduction <add>, %5, %cst_3 [1] : vector<64x128xf32> to vector<64xf32>
    %7 = vector.shape_cast %6 : vector<64xf32> to vector<64x1xf32>
    %cst_4 = arith.constant 1.000000e-24 : f32
    %8 = vector.broadcast %cst_4 : f32 to vector<64x1xf32>
    %9 = arith.maximumf %4, %8 : vector<64x1xf32>
    %10 = math.rsqrt %9 : vector<64x1xf32>
    %11 = math.sqrt %7 : vector<64x1xf32>
    %c0_5 = arith.constant 0 : index
    %12 = memref.load %arg1[%c0_5] : memref<1xf32, #tpu.memory_space<smem>>
    %13 = vector.broadcast %12 : f32 to vector<64x1xf32>
    %14 = arith.mulf %13, %11 : vector<64x1xf32>
    %15 = arith.mulf %14, %10 : vector<64x1xf32>
    %16 = vector.broadcast %15 : vector<64x1xf32> to vector<64x128xf32>
    %17 = arith.mulf %1, %16 : vector<64x128xf32>
    %c0_6 = arith.constant 0 : index
    %c0_7 = arith.constant 0 : index
    %18 = vector.load %arg4[%c0_6, %c0_7] : memref<64x128xf32, #tpu.memory_space<vmem>>, vector<64x128xf32>
    tpu.vector_store %arg4[%c0_6, %c0_7], %17 {strides = array<i32>} : memref<64x128xf32, #tpu.memory_space<vmem>>, vector<64x128xf32>,
    return
  }
  func.func @transform_0(%arg0: i32) -> i32 {
    %c0_i32 = arith.constant 0 : i32
    %c0_i32_0 = arith.constant 0 : i32
    return %c0_i32 : i32
  }
  func.func @transform_1(%arg0: i32) -> (i32, i32) {
    %c0_i32 = arith.constant 0 : i32
    %c0_i32_0 = arith.constant 0 : i32
    return %arg0, %c0_i32 : i32, i32
  }
  func.func @transform_2(%arg0: i32) -> (i32, i32) {
    %c0_i32 = arith.constant 0 : i32
    %c0_i32_0 = arith.constant 0 : i32
    return %arg0, %c0_i32 : i32, i32
  }
  func.func @transform_3(%arg0: i32) -> (i32, i32) {
    %c0_i32 = arith.constant 0 : i32
    %c0_i32_0 = arith.constant 0 : i32
    return %arg0, %c0_i32 : i32, i32
  }
}

</mosaic_0001>

<llo_original>
// kernel: tpu_custom_call.1
$region0: #{tpu_custom_call.1}
  #allocation0 [shape = 'u32[]', space=smem, size = 0x4, offset = 0x4, fixed_abs, tag = 'smem constant byte address 0x4 - core index']
  #allocation1 [shape = 'u32[144,128]{1,0:T(1,128)}', space=vmem, size = 0x12000, scoped, tag = 'internal scratch']
  #allocation2 [shape = 'f32[1]{0:T(128)S(6)}', space=smem, size = 0x200, scoped, tag = 'scoped memory for tpu_custom_call.1']
  %s0 = inlined_call_operand.<no memory space> [shape: f32[1], index: 0, kind: input, shape index: {}]
  %s1 = inlined_call_operand.hbm [shape: f32[64,128], index: 1, kind: input, shape index: {}]
  %s2 = inlined_call_operand.hbm [shape: f32[64,128], index: 2, kind: input, shape index: {}]
  %s3 = inlined_call_operand.hbm [shape: f32[64,128], index: 3, kind: output, shape index: {}]
  %s4 = sld [smem:[#allocation0]]
  $region30: #{tpu_custom_call.1} parent=0
    _
  %s6 = ssub.s32 1, %s4
  %s7 = scalar_select 0, %s6, %s4
  %8 = sst [smem:[#allocation2]] %s0
  $region1: #{tpu_custom_call.1} parent=0
    #allocation3 [shape = 'u8[32768]{0}', space=vmem, size = 0x8000, scoped, tag = 'input window, operand 1, single buffered']
    #allocation4 [shape = 's32[1]{0}', space=sflag, size = 0x4, scoped, tag = 'scoped memory for tpu_custom_call.1']
    #allocation5 [shape = 's32[1]{0}', space=sflag, size = 0x4, scoped, tag = 'scoped memory for tpu_custom_call.1']
    #allocation6 [shape = 'u8[32768]{0}', space=vmem, size = 0x8000, scoped, tag = 'input window, operand 2, single buffered']
    #allocation7 [shape = 's32[1]{0}', space=sflag, size = 0x4, scoped, tag = 'scoped memory for tpu_custom_call.1']
    #allocation8 [shape = 'u8[32768]{0}', space=vmem, size = 0x8000, scoped, tag = 'output window, operand 0, single buffered']
    %9 = vsyncpa [#allocation4], 0
    %10 = vsyncpa [#allocation7], 0
    %11 = vsyncpa [#allocation5], 0
    // Predicated region
    $region2: #{tpu_custom_call.1} parent=1 // pred_check
      _
    $region3: #{tpu_custom_call.1} parent=1 // pred_check_branch
      %13 = sbr.rel (0) target = $region5
    $region4: #{tpu_custom_call.1} parent=1 // pred_region
      _
    $region5: #{tpu_custom_call.1} parent=1 // pred_fallthru
      _
    // Predicated region
    $region6: #{tpu_custom_call.1} parent=1 // pred_check
      _
    $region7: #{tpu_custom_call.1} parent=1 // pred_check_branch
      %15 = sbr.rel (0) target = $region9
    $region8: #{tpu_custom_call.1} parent=1 // pred_region
      %s17 = ssub.s32 1024, 1024
      %18 = vsyncadd [#allocation4], %s17
      %s19 = sshll.u32 [#allocation3], 4
      %s20 = int_to_ptr.vmem [resolvable:$true] %s19
      %25 = dma.hbm_to_vmem [thread:$0]  %s1, 1024, %s20, [#allocation4], 128, 128, 8
    $region9: #{tpu_custom_call.1} parent=1 // pred_fallthru
      _
    // Predicated region
    $region10: #{tpu_custom_call.1} parent=1 // pred_check
      _
    $region11: #{tpu_custom_call.1} parent=1 // pred_check_branch
      %27 = sbr.rel (0) target = $region13
    $region12: #{tpu_custom_call.1} parent=1 // pred_region
      %s29 = ssub.s32 1024, 1024
      %30 = vsyncadd [#allocation7], %s29
      %s31 = sshll.u32 [#allocation6], 4
      %s32 = int_to_ptr.vmem [resolvable:$true] %s31
      %37 = dma.hbm_to_vmem [thread:$0]  %s2, 1024, %s32, [#allocation7], 128, 128, 8
    $region13: #{tpu_custom_call.1} parent=1 // pred_fallthru
      _
    // Predicated region
    $region14: #{tpu_custom_call.1} parent=1 // pred_check
      _
    $region15: #{tpu_custom_call.1} parent=1 // pred_check_branch
      %39 = sbr.rel (0) target = $region17
    $region16: #{tpu_custom_call.1} parent=1 // pred_region
      %40 = dma.done [#allocation4], 1024
    $region17: #{tpu_custom_call.1} parent=1 // pred_fallthru
      _
    // Predicated region
    $region18: #{tpu_custom_call.1} parent=1 // pred_check
      _
    $region19: #{tpu_custom_call.1} parent=1 // pred_check_branch
      %42 = sbr.rel (0) target = $region21
    $region20: #{tpu_custom_call.1} parent=1 // pred_region
      %43 = dma.done [#allocation7], 1024
    $region21: #{tpu_custom_call.1} parent=1 // pred_fallthru
      _
    %v44 = vld [vmem:[#allocation3] sm:$0xff]
    %v45 = vld [vmem:[#allocation3 + $0x8] sm:$0xff]
    %v46 = vld [vmem:[#allocation3 + $0x10] sm:$0xff]
    %v47 = vld [vmem:[#allocation3 + $0x18] sm:$0xff]
    %v48 = vld [vmem:[#allocation3 + $0x20] sm:$0xff]
    %v49 = vld [vmem:[#allocation3 + $0x28] sm:$0xff]
    %v50 = vld [vmem:[#allocation3 + $0x30] sm:$0xff]
    %v51 = vld [vmem:[#allocation3 + $0x38] sm:$0xff]
    %v52 = vld [vmem:[#allocation6] sm:$0xff]
    %v53 = vld [vmem:[#allocation6 + $0x8] sm:$0xff]
    %v54 = vld [vmem:[#allocation6 + $0x10] sm:$0xff]
    %v55 = vld [vmem:[#allocation6 + $0x18] sm:$0xff]
    %v56 = vld [vmem:[#allocation6 + $0x20] sm:$0xff]
    %v57 = vld [vmem:[#allocation6 + $0x28] sm:$0xff]
    %v58 = vld [vmem:[#allocation6 + $0x30] sm:$0xff]
    %v59 = vld [vmem:[#allocation6 + $0x38] sm:$0xff]
    %v60 = vmul.f32 %v52, %v52
    %v61 = vmul.f32 %v53, %v53
    %v62 = vmul.f32 %v54, %v54
    %v63 = vmul.f32 %v55, %v55
    %v64 = vmul.f32 %v56, %v56
    %v65 = vmul.f32 %v57, %v57
    %v66 = vmul.f32 %v58, %v58
    %v67 = vmul.f32 %v59, %v59
    %68 = vadd.xlane.f32.xlu0 %v60
    %v69 = vpop.xlane.xlu0 %68
    %70 = vadd.xlane.f32.xlu0 %v61
    %v71 = vpop.xlane.xlu0 %70
    %72 = vadd.xlane.f32.xlu0 %v62
    %v73 = vpop.xlane.xlu0 %72
    %74 = vadd.xlane.f32.xlu0 %v63
    %v75 = vpop.xlane.xlu0 %74
    %76 = vadd.xlane.f32.xlu0 %v64
    %v77 = vpop.xlane.xlu0 %76
    %78 = vadd.xlane.f32.xlu0 %v65
    %v79 = vpop.xlane.xlu0 %78
    %80 = vadd.xlane.f32.xlu0 %v66
    %v81 = vpop.xlane.xlu0 %80
    %82 = vadd.xlane.f32.xlu0 %v67
    %v83 = vpop.xlane.xlu0 %82
    %v84 = vmul.f32 %v44, %v44
    %v85 = vmul.f32 %v45, %v45
    %v86 = vmul.f32 %v46, %v46
    %v87 = vmul.f32 %v47, %v47
    %v88 = vmul.f32 %v48, %v48
    %v89 = vmul.f32 %v49, %v49
    %v90 = vmul.f32 %v50, %v50
    %v91 = vmul.f32 %v51, %v51
    %92 = vadd.xlane.f32.xlu0 %v84
    %v93 = vpop.xlane.xlu0 %92
    %94 = vadd.xlane.f32.xlu0 %v85
    %v95 = vpop.xlane.xlu0 %94
    %96 = vadd.xlane.f32.xlu0 %v86
    %v97 = vpop.xlane.xlu0 %96
    %98 = vadd.xlane.f32.xlu0 %v87
    %v99 = vpop.xlane.xlu0 %98
    %100 = vadd.xlane.f32.xlu0 %v88
    %v101 = vpop.xlane.xlu0 %100
    %102 = vadd.xlane.f32.xlu0 %v89
    %v103 = vpop.xlane.xlu0 %102
    %104 = vadd.xlane.f32.xlu0 %v90
    %v105 = vpop.xlane.xlu0 %104
    %106 = vadd.xlane.f32.xlu0 %v91
    %v107 = vpop.xlane.xlu0 %106
    %v108 = vmax.f32 %v69, 1e-24
    %v109 = vmax.f32 %v71, 1e-24
    %v110 = vmax.f32 %v73, 1e-24
    %v111 = vmax.f32 %v75, 1e-24
    %v112 = vmax.f32 %v77, 1e-24
    %v113 = vmax.f32 %v79, 1e-24
    %v114 = vmax.f32 %v81, 1e-24
    %v115 = vmax.f32 %v83, 1e-24
    %v116 = vrsqrt.pop %v108
    %v117 = vrsqrt.pop %v109
    %v118 = vrsqrt.pop %v110
    %v119 = vrsqrt.pop %v111
    %v120 = vrsqrt.pop %v112
    %v121 = vrsqrt.pop %v113
    %v122 = vrsqrt.pop %v114
    %v123 = vrsqrt.pop %v115
    %v124 = vrsqrt.pop %v93
    %v125 = vmul.f32 %v93, %v124
    %vm126 = vcmp.eq.f32.partialorder %v93, inf
    %v127 = vsel %vm126, %v93, %v125
    %vm128 = vcmp.eq.f32.partialorder %v93, 0.0
    %v129 = vand.u32 %v93, 2147483648
    %v130 = vsel %vm128, %v129, %v127
    %v131 = vrsqrt.pop %v95
    %v132 = vmul.f32 %v95, %v131
    %vm133 = vcmp.eq.f32.partialorder %v95, inf
    %v134 = vsel %vm133, %v95, %v132
    %vm135 = vcmp.eq.f32.partialorder %v95, 0.0
    %v136 = vand.u32 %v95, 2147483648
    %v137 = vsel %vm135, %v136, %v134
    %v138 = vrsqrt.pop %v97
    %v139 = vmul.f32 %v97, %v138
    %vm140 = vcmp.eq.f32.partialorder %v97, inf
    %v141 = vsel %vm140, %v97, %v139
    %vm142 = vcmp.eq.f32.partialorder %v97, 0.0
    %v143 = vand.u32 %v97, 2147483648
    %v144 = vsel %vm142, %v143, %v141
    %v145 = vrsqrt.pop %v99
    %v146 = vmul.f32 %v99, %v145
    %vm147 = vcmp.eq.f32.partialorder %v99, inf
    %v148 = vsel %vm147, %v99, %v146
    %vm149 = vcmp.eq.f32.partialorder %v99, 0.0
    %v150 = vand.u32 %v99, 2147483648
    %v151 = vsel %vm149, %v150, %v148
    %v152 = vrsqrt.pop %v101
    %v153 = vmul.f32 %v101, %v152
    %vm154 = vcmp.eq.f32.partialorder %v101, inf
    %v155 = vsel %vm154, %v101, %v153
    %vm156 = vcmp.eq.f32.partialorder %v101, 0.0
    %v157 = vand.u32 %v101, 2147483648
    %v158 = vsel %vm156, %v157, %v155
    %v159 = vrsqrt.pop %v103
    %v160 = vmul.f32 %v103, %v159
    %vm161 = vcmp.eq.f32.partialorder %v103, inf
    %v162 = vsel %vm161, %v103, %v160
    %vm163 = vcmp.eq.f32.partialorder %v103, 0.0
    %v164 = vand.u32 %v103, 2147483648
    %v165 = vsel %vm163, %v164, %v162
    %v166 = vrsqrt.pop %v105
    %v167 = vmul.f32 %v105, %v166
    %vm168 = vcmp.eq.f32.partialorder %v105, inf
    %v169 = vsel %vm168, %v105, %v167
    %vm170 = vcmp.eq.f32.partialorder %v105, 0.0
    %v171 = vand.u32 %v105, 2147483648
    %v172 = vsel %vm170, %v171, %v169
    %v173 = vrsqrt.pop %v107
    %v174 = vmul.f32 %v107, %v173
    %vm175 = vcmp.eq.f32.partialorder %v107, inf
    %v176 = vsel %vm175, %v107, %v174
    %vm177 = vcmp.eq.f32.partialorder %v107, 0.0
    %v178 = vand.u32 %v107, 2147483648
    %v179 = vsel %vm177, %v178, %v176
    %s180 = sld [smem:[#allocation2]]
    %v181 = vstv %s180
    %v182 = vmul.f32 %v181, %v130
    %v183 = vmul.f32 %v181, %v137
    %v184 = vmul.f32 %v181, %v144
    %v185 = vmul.f32 %v181, %v151
    %v186 = vmul.f32 %v181, %v158
    %v187 = vmul.f32 %v181, %v165
    %v188 = vmul.f32 %v181, %v172
    %v189 = vmul.f32 %v181, %v179
    %v190 = vmul.f32 %v182, %v116
    %v191 = vmul.f32 %v183, %v117
    %v192 = vmul.f32 %v184, %v118
    %v193 = vmul.f32 %v185, %v119
    %v194 = vmul.f32 %v186, %v120
    %v195 = vmul.f32 %v187, %v121
    %v196 = vmul.f32 %v188, %v122
    %v197 = vmul.f32 %v189, %v123
    %v198 = vmul.f32 %v52, %v190
    %v199 = vmul.f32 %v53, %v191
    %v200 = vmul.f32 %v54, %v192
    %v201 = vmul.f32 %v55, %v193
    %v202 = vmul.f32 %v56, %v194
    %v203 = vmul.f32 %v57, %v195
    %v204 = vmul.f32 %v58, %v196
    %v205 = vmul.f32 %v59, %v197
    %206 = vst [vmem:[#allocation8] sm:$0xff] %v198
    %207 = vst [vmem:[#allocation8 + $0x8] sm:$0xff] %v199
    %208 = vst [vmem:[#allocation8 + $0x10] sm:$0xff] %v200
    %209 = vst [vmem:[#allocation8 + $0x18] sm:$0xff] %v201
    %210 = vst [vmem:[#allocation8 + $0x20] sm:$0xff] %v202
    %211 = vst [vmem:[#allocation8 + $0x28] sm:$0xff] %v203
    %212 = vst [vmem:[#allocation8 + $0x30] sm:$0xff] %v204
    %213 = vst [vmem:[#allocation8 + $0x38] sm:$0xff] %v205
    // Predicated region
    $region22: #{tpu_custom_call.1} parent=1 // pred_check
      _
    $region23: #{tpu_custom_call.1} parent=1 // pred_check_branch
      %215 = sbr.rel (0) target = $region25
    $region24: #{tpu_custom_call.1} parent=1 // pred_region
      %s217 = ssub.s32 1024, 1024
      %218 = vsyncadd [#allocation5], %s217
      %s219 = sshll.u32 [#allocation8], 4
      %s220 = int_to_ptr.vmem [resolvable:$true] %s219
      %225 = dma.vmem_to_hbm [thread:$0]  %s220, 1024, %s3, [#allocation5], 128, 128, 8
    $region25: #{tpu_custom_call.1} parent=1 // pred_fallthru
      _
    // Predicated region
    $region26: #{tpu_custom_call.1} parent=1 // pred_check
      _
    $region27: #{tpu_custom_call.1} parent=1 // pred_check_branch
      %227 = sbr.rel (0) target = $region29
    $region28: #{tpu_custom_call.1} parent=1 // pred_region
      %228 = dma.done [#allocation5], 1024
    $region29: #{tpu_custom_call.1} parent=1 // pred_fallthru
      _
    %229 = vsyncpa [#allocation4], 1
    %230 = vsyncpa [#allocation7], 1
    %231 = vsyncpa [#allocation5], 1

</llo_original>
